<compile_context>
chip_gen: v7x
topology: tpu7x:2x2x1
jax: 0.10.0
libtpu: 0.0.40
codegen_flags: <defaults>
</compile_context>

<pallas_src>
import functools
import math

import jax
import jax.numpy as jnp
from jax.experimental import pallas as pl
from jax.experimental.pallas import tpu as pltpu

LN_EPS = 1e-5  # torch.nn.LayerNorm default


def build_lowpass_matrix(seq_len: int, c_keep: int) -> jnp.ndarray:
    """Real (S, S) matrix equivalent to
       irfft(mask * rfft(x, dim=seq, norm='ortho'), n=S, dim=seq, norm='ortho')."""
    eye = jnp.eye(seq_len, dtype=jnp.float32)
    freq = jnp.fft.rfft(eye, axis=0, norm="ortho")                  # (S//2+1, S)
    mask = (jnp.arange(seq_len // 2 + 1) < c_keep).astype(freq.dtype)
    m = jnp.fft.irfft(freq * mask[:, None], n=seq_len, axis=0, norm="ortho")
    return m.astype(jnp.float32)                                    # (S, S)


def _ln_epilogue(x, low, sb_row, g_row, b_row, a_blk, inv_h, out_dtype):
    """Residual + sqrt_beta^2 mix + per-H-chunk LayerNorm (all f32 elementwise;
    chunk reductions via bf16 ones-matrix MXU dots, f32 accumulate + scale)."""
    high = x - low
    sb2 = sb_row * sb_row
    # TODO(synk): dropout omitted (eval-mode identity); add PRNG mask for training.
    h = low + sb2 * high + x                       # sequence_emb_fft + residual
    mean = jnp.dot(h.astype(jnp.bfloat16), a_blk,
                   preferred_element_type=jnp.float32) * inv_h
    cent = h - mean
    var = jnp.dot((cent * cent).astype(jnp.bfloat16), a_blk,
                  preferred_element_type=jnp.float32) * inv_h
    normed = cent * jax.lax.rsqrt(var + LN_EPS)
    return (normed * g_row + b_row).astype(out_dtype)


def freq_fused_kernel(m_ref, x_ref, a_ref, sb_ref, g_ref, b_ref, o_ref, *, inv_h):
    # m_ref: (sP, sP) bf16 low-pass filter; x_ref: (sP, tn) f32 folded slab;
    # a_ref: (tn, tn) bf16 block-diag ones; sb/g/b: (1, tn) f32; o_ref: (sP, tn).
    x = x_ref[...]
    low = jnp.dot(m_ref[...], x.astype(jnp.bfloat16),
                  preferred_element_type=jnp.float32)
    o_ref[...] = _ln_epilogue(x, low, sb_ref[...], g_ref[...], b_ref[...],
                              a_ref[...], inv_h, o_ref.dtype)


def freq_split_kernel(m_ref, xk_ref, xs_ref, a_ref, sb_ref, g_ref, b_ref,
                      o_ref, acc_ref, *, inv_h):
    # Fallback for large S: contraction split over the sequence axis.
    k = pl.program_id(2)

    @pl.when(k == 0)
    def _init():
        acc_ref[...] = jnp.zeros_like(acc_ref)

    acc_ref[...] += jnp.dot(m_ref[...], xk_ref[...],
                            preferred_element_type=jnp.float32)

    @pl.when(k == pl.num_programs(2) - 1)
    def _finalize():
        x = xs_ref[...]
        o_ref[...] = _ln_epilogue(x, acc_ref[...], sb_ref[...], g_ref[...],
                                  b_ref[...], a_ref[...], inv_h, o_ref.dtype)


def _round_up(x: int, m: int) -> int:
    return ((x + m - 1) // m) * m


def _pick_lane_tile(hidden: int, batch: int):
    """Per-chunk width Hc and lane tile tn with tn % Hc == 0 and tn % 128 == 0."""
    lcm_h = hidden * 128 // math.gcd(hidden, 128)
    if lcm_h <= 512:
        hc, tn = hidden, lcm_h
    else:
        hc = _round_up(hidden, 128)   # pad each hidden chunk to a lane multiple
        tn = hc
    # Prefer a 256-wide lane tile (native v6e/v7x MXU width) when data fills it.
    while tn < 256 and batch * hc > tn:
        tn *= 2
    return hc, tn


def frequency_layer(x, sqrt_beta, ln_gamma, ln_beta, c):
    """Forward pass of FrequencyLayer (eval mode). x: (B, S, H)."""
    B, S, H = x.shape
    c_keep = c // 2 + 1

    hc, tn = _pick_lane_tile(H, B)
    n_fold = B * hc
    n_pad = _round_up(n_fold, tn)

    split_k = S > 512
    s_pad = _round_up(S, 256) if split_k else _round_up(S, 16)

    # ---- layout plumbing (plain JAX): fold batch into the lane dimension ----
    x_t = jnp.transpose(x, (1, 0, 2)).astype(jnp.float32)           # (S, B, H)
    if hc != H:
        x_t = jnp.pad(x_t, ((0, 0), (0, 0), (0, hc - H)))
    slab = x_t.reshape(S, n_fold)
    slab = jnp.pad(slab, ((0, s_pad - S), (0, n_pad - n_fold)))     # f32

    m = build_lowpass_matrix(S, c_keep)
    m = jnp.pad(m, ((0, s_pad - S), (0, s_pad - S))).astype(jnp.bfloat16)

    # Shared (tn, tn) bf16 block-diagonal ones tile for per-H-chunk LN sums
    # (padded rows inside a chunk are masked out; 1/H applied in f32 in-kernel).
    col = jnp.arange(tn)
    same_chunk = (col[:, None] // hc) == (col[None, :] // hc)
    valid_row = (col[:, None] % hc) < H
    a_blk = (same_chunk & valid_row).astype(jnp.bfloat16)

    def tile_param(p):
        p = p.reshape(H).astype(jnp.float32)
        if hc != H:
            p = jnp.pad(p, (0, hc - H))
        return jnp.tile(p, tn // hc).reshape(1, tn)

    sb_t = tile_param(sqrt_beta)
    g_t = tile_param(ln_gamma)
    b_t = tile_param(ln_beta)

    inv_h = 1.0 / H
    out_itemsize = jnp.dtype(x.dtype).itemsize
    cost = pl.CostEstimate(
        flops=int(2 * s_pad * s_pad * n_pad           # low-pass filter matmul
                  + 4 * s_pad * tn * n_pad            # LN mean/var matmuls
                  + 12 * s_pad * n_pad),              # elementwise epilogue
        transcendentals=int(s_pad * n_pad),           # rsqrt
        bytes_accessed=int(s_pad * n_pad * (4 + out_itemsize)
                           + s_pad * s_pad * 2
                           + tn * tn * 2 + 3 * tn * 4),
    )

    if not split_k:
        # Common case: fused kernel, no K split, no accumulator scratch,
        # single f32 slab read (bf16 cast for the MXU happens in-kernel).
        grid = (n_pad // tn,)
        out = pl.pallas_call(
            functools.partial(freq_fused_kernel, inv_h=inv_h),
            out_shape=jax.ShapeDtypeStruct((s_pad, n_pad), x.dtype),
            grid_spec=pltpu.PrefetchScalarGridSpec(
                num_scalar_prefetch=0,
                grid=grid,
                in_specs=[
                    pl.BlockSpec((s_pad, s_pad), lambda n: (0, 0)),  # M (bf16)
                    pl.BlockSpec((s_pad, tn), lambda n: (0, n)),     # slab (f32)
                    pl.BlockSpec((tn, tn), lambda n: (0, 0)),        # A (shared bf16)
                    pl.BlockSpec((1, tn), lambda n: (0, 0)),         # sqrt_beta
                    pl.BlockSpec((1, tn), lambda n: (0, 0)),         # LN gamma
                    pl.BlockSpec((1, tn), lambda n: (0, 0)),         # LN beta
                ],
                out_specs=pl.BlockSpec((s_pad, tn), lambda n: (0, n)),
            ),
            compiler_params=pltpu.CompilerParams(
                dimension_semantics=("parallel",)),
            cost_estimate=cost,
        )(m, slab, a_blk, sb_t, g_t, b_t)
    else:
        # Large-S fallback: split the contraction; keep a bf16 slab copy as the
        # re-read matmul RHS, f32 slab only for the (once-per-output-tile) epilogue.
        ts = 512 if s_pad % 512 == 0 else 256
        tk = 256
        slab_bf16 = slab.astype(jnp.bfloat16)
        grid = (n_pad // tn, s_pad // ts, s_pad // tk)
        out = pl.pallas_call(
            functools.partial(freq_split_kernel, inv_h=inv_h),
            out_shape=jax.ShapeDtypeStruct((s_pad, n_pad), x.dtype),
            grid_spec=pltpu.PrefetchScalarGridSpec(
                num_scalar_prefetch=0,
                grid=grid,
                in_specs=[
                    pl.BlockSpec((ts, tk), lambda n, s, k: (s, k)),  # M (bf16)
                    pl.BlockSpec((tk, tn), lambda n, s, k: (k, n)),  # slab bf16 (RHS)
                    pl.BlockSpec((ts, tn), lambda n, s, k: (s, n)),  # slab f32
                    pl.BlockSpec((tn, tn), lambda n, s, k: (0, 0)),  # A (shared)
                    pl.BlockSpec((1, tn), lambda n, s, k: (0, 0)),   # sqrt_beta
                    pl.BlockSpec((1, tn), lambda n, s, k: (0, 0)),   # LN gamma
                    pl.BlockSpec((1, tn), lambda n, s, k: (0, 0)),   # LN beta
                ],
                out_specs=pl.BlockSpec((ts, tn), lambda n, s, k: (s, n)),
                scratch_shapes=[pltpu.VMEM((ts, tn), jnp.float32)],
            ),
            compiler_params=pltpu.CompilerParams(
                dimension_semantics=("parallel", "parallel", "arbitrary")),
            cost_estimate=cost,
        )(m, slab_bf16, slab, a_blk, sb_t, g_t, b_t)

    # Undo the layout fold: (s_pad, n_pad) -> (B, S, H).
    out = out[:S, :n_fold].reshape(S, B, hc)[:, :, :H]
    return jnp.transpose(out, (1, 0, 2))


def reference(x, sqrt_beta, ln_gamma, ln_beta, c):
    """Pure-JAX f32 reference matching the PyTorch forward (eval mode)."""
    B, S, H = x.shape
    c_keep = c // 2 + 1
    freq = jnp.fft.rfft(x.astype(jnp.float32), axis=1, norm="ortho")
    mask = (jnp.arange(S // 2 + 1) < c_keep).astype(freq.dtype)
    low = jnp.fft.irfft(freq * mask[None, :, None], n=S, axis=1, norm="ortho")
    low = jnp.real(low).astype(jnp.float32)
    high = x - low
    emb = low + (sqrt_beta ** 2) * high
    h = emb + x
    mean = jnp.mean(h, axis=-1, keepdims=True)
    var = jnp.mean((h - mean) ** 2, axis=-1, keepdims=True)
    return ((h - mean) / jnp.sqrt(var + LN_EPS) * ln_gamma.reshape(1, 1, H)
            + ln_beta.reshape(1, 1, H))


if __name__ == "__main__":
    B, S, H, c = 2, 16, 32, 9  # batch, seq_len, hidden_dim, c (module default)

    key = jax.random.PRNGKey(0)
    k_x, k_sb = jax.random.split(key)
    x = jax.random.normal(k_x, (B, S, H), dtype=jnp.float32)
    sqrt_beta = jax.random.normal(k_sb, (1, 1, H), dtype=jnp.float32)  # nn.Parameter(randn)
    ln_gamma = jnp.ones((H,), jnp.float32)    # nn.LayerNorm default weight
    ln_beta = jnp.zeros((H,), jnp.float32)    # nn.LayerNorm default bias

    out = frequency_layer(x, sqrt_beta, ln_gamma, ln_beta, c)
    jax.block_until_ready(out)

    ref = reference(x, sqrt_beta, ln_gamma, ln_beta, c)
    max_err = jnp.max(jnp.abs(out - ref))
    # Tolerance loosened vs the f32 FFT reference because the filter and
    # LayerNorm reductions run with bf16 MXU operands (f32 accumulation).
    assert jnp.allclose(out, ref, atol=5e-2, rtol=5e-2), \
        f"mismatch vs reference (max abs err {max_err})"

    print("KERNEL_OK")
</pallas_src>

<mosaic_0001>
module attributes {stable_mosaic.version = 11 : i64} {
  func.func @freq_fused_kernel(%arg0: i32, %arg1: memref<16x16xbf16, #tpu.memory_space<vmem>>, %arg2: memref<16x128xf32, #tpu.memory_space<vmem>>, %arg3: memref<128x128xbf16, #tpu.memory_space<vmem>>, %arg4: memref<1x128xf32, #tpu.memory_space<vmem>>, %arg5: memref<1x128xf32, #tpu.memory_space<vmem>>, %arg6: memref<1x128xf32, #tpu.memory_space<vmem>>, %arg7: memref<16x128xf32, #tpu.memory_space<vmem>>) attributes {dimension_semantics = [#tpu.dimension_semantics<parallel>], iteration_bounds = array<i64: 1>, scalar_prefetch = 0 : i64, scratch_operands = 0 : i64, tpu.core_type = #tpu.core_type<tc>, window_params = [{pipeline_mode = #tpu.pipeline_mode<synchronous>, transform_indices = @transform_0, window_bounds = array<i64: 16, 16>}, {transform_indices = @transform_1, window_bounds = array<i64: 16, 128>}, {pipeline_mode = #tpu.pipeline_mode<synchronous>, transform_indices = @transform_2, window_bounds = array<i64: 128, 128>}, {pipeline_mode = #tpu.pipeline_mode<synchronous>, transform_indices = @transform_3, window_bounds = array<i64: 1, 128>}, {pipeline_mode = #tpu.pipeline_mode<synchronous>, transform_indices = @transform_4, window_bounds = array<i64: 1, 128>}, {pipeline_mode = #tpu.pipeline_mode<synchronous>, transform_indices = @transform_5, window_bounds = array<i64: 1, 128>}, {transform_indices = @transform_6, window_bounds = array<i64: 16, 128>}]} {
    %c0 = arith.constant 0 : index
    %c0_0 = arith.constant 0 : index
    %0 = vector.load %arg2[%c0, %c0_0] : memref<16x128xf32, #tpu.memory_space<vmem>>, vector<16x128xf32>
    %c0_1 = arith.constant 0 : index
    %c0_2 = arith.constant 0 : index
    %1 = vector.load %arg1[%c0_1, %c0_2] : memref<16x16xbf16, #tpu.memory_space<vmem>>, vector<16x16xbf16>
    %2 = arith.truncf %0 : vector<16x128xf32> to vector<16x128xbf16>
    %cst = arith.constant dense<0.000000e+00> : vector<16x128xf32>
    %3 = tpu.matmul %1, %2, %cst {dimension_numbers = #tpu.dot_dimension_numbers<[1], [0], [0], [1], [0, 0, 1, 1], [], []>} : vector<16x16xbf16>, vector<16x128xbf16>, vector<16x128xf32> -> vector<16x128xf32>
    %c0_3 = arith.constant 0 : index
    %c0_4 = arith.constant 0 : index
    %4 = vector.load %arg4[%c0_3, %c0_4] : memref<1x128xf32, #tpu.memory_space<vmem>>, vector<1x128xf32>
    %c0_5 = arith.constant 0 : index
    %c0_6 = arith.constant 0 : index
    %5 = vector.load %arg5[%c0_5, %c0_6] : memref<1x128xf32, #tpu.memory_space<vmem>>, vector<1x128xf32>
    %c0_7 = arith.constant 0 : index
    %c0_8 = arith.constant 0 : index
    %6 = vector.load %arg6[%c0_7, %c0_8] : memref<1x128xf32, #tpu.memory_space<vmem>>, vector<1x128xf32>
    %c0_9 = arith.constant 0 : index
    %c0_10 = arith.constant 0 : index
    %7 = vector.load %arg3[%c0_9, %c0_10] : memref<128x128xbf16, #tpu.memory_space<vmem>>, vector<128x128xbf16>
    %8 = arith.subf %0, %3 : vector<16x128xf32>
    %9 = arith.mulf %4, %4 : vector<1x128xf32>
    %10 = vector.broadcast %9 : vector<1x128xf32> to vector<16x128xf32>
    %11 = arith.mulf %10, %8 : vector<16x128xf32>
    %12 = arith.addf %3, %11 : vector<16x128xf32>
    %13 = arith.addf %12, %0 : vector<16x128xf32>
    %14 = arith.truncf %13 : vector<16x128xf32> to vector<16x128xbf16>
    %cst_11 = arith.constant dense<0.000000e+00> : vector<16x128xf32>
    %15 = tpu.matmul %14, %7, %cst_11 {dimension_numbers = #tpu.dot_dimension_numbers<[1], [0], [0], [1], [0, 0, 1, 1], [], []>} : vector<16x128xbf16>, vector<128x128xbf16>, vector<16x128xf32> -> vector<16x128xf32>
    %cst_12 = arith.constant 3.125000e-02 : f32
    %16 = vector.broadcast %cst_12 : f32 to vector<16x128xf32>
    %17 = arith.mulf %15, %16 : vector<16x128xf32>
    %18 = arith.subf %13, %17 : vector<16x128xf32>
    %19 = arith.mulf %18, %18 : vector<16x128xf32>
    %20 = arith.truncf %19 : vector<16x128xf32> to vector<16x128xbf16>
    %cst_13 = arith.constant dense<0.000000e+00> : vector<16x128xf32>
    %21 = tpu.matmul %20, %7, %cst_13 {dimension_numbers = #tpu.dot_dimension_numbers<[1], [0], [0], [1], [0, 0, 1, 1], [], []>} : vector<16x128xbf16>, vector<128x128xbf16>, vector<16x128xf32> -> vector<16x128xf32>
    %cst_14 = arith.constant 3.125000e-02 : f32
    %22 = vector.broadcast %cst_14 : f32 to vector<16x128xf32>
    %23 = arith.mulf %21, %22 : vector<16x128xf32>
    %cst_15 = arith.constant 9.99999974E-6 : f32
    %24 = vector.broadcast %cst_15 : f32 to vector<16x128xf32>
    %25 = arith.addf %23, %24 : vector<16x128xf32>
    %26 = math.rsqrt %25 : vector<16x128xf32>
    %27 = arith.mulf %18, %26 : vector<16x128xf32>
    %28 = vector.broadcast %5 : vector<1x128xf32> to vector<16x128xf32>
    %29 = arith.mulf %27, %28 : vector<16x128xf32>
    %30 = vector.broadcast %6 : vector<1x128xf32> to vector<16x128xf32>
    %31 = arith.addf %29, %30 : vector<16x128xf32>
    %c0_16 = arith.constant 0 : index
    %c0_17 = arith.constant 0 : index
    %32 = vector.load %arg7[%c0_16, %c0_17] : memref<16x128xf32, #tpu.memory_space<vmem>>, vector<16x128xf32>
    tpu.vector_store %arg7[%c0_16, %c0_17], %31 {strides = array<i32>} : memref<16x128xf32, #tpu.memory_space<vmem>>, vector<16x128xf32>,
    return
  }
  func.func @transform_0(%arg0: i32) -> (i32, i32) {
    %c0_i32 = arith.constant 0 : i32
    %c0_i32_0 = arith.constant 0 : i32
    %c0_i32_1 = arith.constant 0 : i32
    return %c0_i32, %c0_i32_0 : i32, i32
  }
  func.func @transform_1(%arg0: i32) -> (i32, i32) {
    %c0_i32 = arith.constant 0 : i32
    %c0_i32_0 = arith.constant 0 : i32
    return %c0_i32, %arg0 : i32, i32
  }
  func.func @transform_2(%arg0: i32) -> (i32, i32) {
    %c0_i32 = arith.constant 0 : i32
    %c0_i32_0 = arith.constant 0 : i32
    %c0_i32_1 = arith.constant 0 : i32
    return %c0_i32, %c0_i32_0 : i32, i32
  }
  func.func @transform_3(%arg0: i32) -> (i32, i32) {
    %c0_i32 = arith.constant 0 : i32
    %c0_i32_0 = arith.constant 0 : i32
    %c0_i32_1 = arith.constant 0 : i32
    return %c0_i32, %c0_i32_0 : i32, i32
  }
  func.func @transform_4(%arg0: i32) -> (i32, i32) {
    %c0_i32 = arith.constant 0 : i32
    %c0_i32_0 = arith.constant 0 : i32
    %c0_i32_1 = arith.constant 0 : i32
    return %c0_i32, %c0_i32_0 : i32, i32
  }
  func.func @transform_5(%arg0: i32) -> (i32, i32) {
    %c0_i32 = arith.constant 0 : i32
    %c0_i32_0 = arith.constant 0 : i32
    %c0_i32_1 = arith.constant 0 : i32
    return %c0_i32, %c0_i32_0 : i32, i32
  }
  func.func @transform_6(%arg0: i32) -> (i32, i32) {
    %c0_i32 = arith.constant 0 : i32
    %c0_i32_0 = arith.constant 0 : i32
    return %c0_i32, %arg0 : i32, i32
  }
}

</mosaic_0001>

<llo_original>
// kernel: tpu_custom_call.1
$region0: #{tpu_custom_call.1}
  #allocation0 [shape = 'u32[]', space=smem, size = 0x4, offset = 0x4, fixed_abs, tag = 'smem constant byte address 0x4 - core index']
  #allocation1 [shape = 'u32[144,128]{1,0:T(1,128)}', space=vmem, size = 0x12000, scoped, tag = 'internal scratch']
  %s0 = inlined_call_operand.hbm [shape: bf16[16,16], index: 0, kind: input, shape index: {}]
  %s1 = inlined_call_operand.hbm [shape: f32[16,128], index: 1, kind: input, shape index: {}]
  %s2 = inlined_call_operand.hbm [shape: bf16[128,128], index: 2, kind: input, shape index: {}]
  %s3 = inlined_call_operand.vmem [shape: f32[1,128], index: 3, kind: input, shape index: {}]
  %s4 = inlined_call_operand.vmem [shape: f32[1,128], index: 4, kind: input, shape index: {}]
  %s5 = inlined_call_operand.vmem [shape: f32[1,128], index: 5, kind: input, shape index: {}]
  %s6 = inlined_call_operand.hbm [shape: f32[16,128], index: 6, kind: output, shape index: {}]
  %s7 = sld [smem:[#allocation0]]
  $region46: #{tpu_custom_call.1} parent=0
    _
  %s9 = ssub.s32 1, %s7
  %s10 = scalar_select 0, %s9, %s7
  $region1: #{tpu_custom_call.1} parent=0
    #allocation2 [shape = 'u8[4096]{0}', space=vmem, size = 0x1000, scoped, tag = 'input window, operand 0, single buffered']
    #allocation3 [shape = 's32[1]{0}', space=sflag, size = 0x4, scoped, tag = 'scoped memory for tpu_custom_call.1']
    #allocation4 [shape = 's32[1]{0}', space=sflag, size = 0x4, scoped, tag = 'scoped memory for tpu_custom_call.1']
    #allocation5 [shape = 'u8[8192]{0}', space=vmem, size = 0x2000, scoped, tag = 'input window, operand 1, single buffered']
    #allocation6 [shape = 's32[1]{0}', space=sflag, size = 0x4, scoped, tag = 'scoped memory for tpu_custom_call.1']
    #allocation7 [shape = 'u8[32768]{0}', space=vmem, size = 0x8000, scoped, tag = 'input window, operand 2, single buffered']
    #allocation8 [shape = 'u8[8192]{0}', space=vmem, size = 0x2000, scoped, tag = 'output window, operand 0, single buffered']
    %11 = vsyncpa [#allocation3], 0
    %12 = vsyncpa [#allocation6], 0
    %13 = vsyncpa [#allocation4], 0
    // Predicated region
    $region2: #{tpu_custom_call.1} parent=1 // pred_check
      _
    $region3: #{tpu_custom_call.1} parent=1 // pred_check_branch
      %15 = sbr.rel (0) target = $region5
    $region4: #{tpu_custom_call.1} parent=1 // pred_region
      %s17 = ssub.s32 128, 128
      %18 = vsyncadd [#allocation3], %s17
      %s19 = sshll.u32 [#allocation2], 4
      %s20 = int_to_ptr.vmem [resolvable:$true] %s19
      %25 = dma.hbm_to_vmem [thread:$0]  %s0, 128, %s20, [#allocation3], 64, 64, 4
    $region5: #{tpu_custom_call.1} parent=1 // pred_fallthru
      _
    // Predicated region
    $region6: #{tpu_custom_call.1} parent=1 // pred_check
      _
    $region7: #{tpu_custom_call.1} parent=1 // pred_check_branch
      %27 = sbr.rel (0) target = $region9
    $region8: #{tpu_custom_call.1} parent=1 // pred_region
      %s29 = ssub.s32 256, 256
      %30 = vsyncadd [#allocation6], %s29
      %s31 = sshll.u32 [#allocation5], 4
      %s32 = int_to_ptr.vmem [resolvable:$true] %s31
      %37 = dma.hbm_to_vmem [thread:$0]  %s1, 256, %s32, [#allocation6], 128, 128, 8
    $region9: #{tpu_custom_call.1} parent=1 // pred_fallthru
      _
    // Predicated region
    $region10: #{tpu_custom_call.1} parent=1 // pred_check
      _
    $region11: #{tpu_custom_call.1} parent=1 // pred_check_branch
      %39 = sbr.rel (0) target = $region13
    $region12: #{tpu_custom_call.1} parent=1 // pred_region
      %s41 = ssub.s32 1024, 1024
      %42 = vsyncadd [#allocation6], %s41
      %s43 = sshll.u32 [#allocation7], 4
      %s44 = int_to_ptr.vmem [resolvable:$true] %s43
      %49 = dma.hbm_to_vmem [thread:$0]  %s2, 1024, %s44, [#allocation6], 64, 64, 4
    $region13: #{tpu_custom_call.1} parent=1 // pred_fallthru
      _
    // Predicated region
    $region14: #{tpu_custom_call.1} parent=1 // pred_check
      _
    $region15: #{tpu_custom_call.1} parent=1 // pred_check_branch
      %51 = sbr.rel (0) target = $region17
    $region16: #{tpu_custom_call.1} parent=1 // pred_region
      _
    $region17: #{tpu_custom_call.1} parent=1 // pred_fallthru
      _
    // Predicated region
    $region18: #{tpu_custom_call.1} parent=1 // pred_check
      _
    $region19: #{tpu_custom_call.1} parent=1 // pred_check_branch
      %53 = sbr.rel (0) target = $region21
    $region20: #{tpu_custom_call.1} parent=1 // pred_region
      _
    $region21: #{tpu_custom_call.1} parent=1 // pred_fallthru
      _
    // Predicated region
    $region22: #{tpu_custom_call.1} parent=1 // pred_check
      _
    $region23: #{tpu_custom_call.1} parent=1 // pred_check_branch
      %55 = sbr.rel (0) target = $region25
    $region24: #{tpu_custom_call.1} parent=1 // pred_region
      _
    $region25: #{tpu_custom_call.1} parent=1 // pred_fallthru
      _
    // Predicated region
    $region26: #{tpu_custom_call.1} parent=1 // pred_check
      _
    $region27: #{tpu_custom_call.1} parent=1 // pred_check_branch
      %57 = sbr.rel (0) target = $region29
    $region28: #{tpu_custom_call.1} parent=1 // pred_region
      %58 = dma.done [#allocation3], 128
    $region29: #{tpu_custom_call.1} parent=1 // pred_fallthru
      _
    // Predicated region
    $region30: #{tpu_custom_call.1} parent=1 // pred_check
      _
    $region31: #{tpu_custom_call.1} parent=1 // pred_check_branch
      %60 = sbr.rel (0) target = $region33
    $region32: #{tpu_custom_call.1} parent=1 // pred_region
      %61 = dma.done [#allocation6], 256
    $region33: #{tpu_custom_call.1} parent=1 // pred_fallthru
      _
    // Predicated region
    $region34: #{tpu_custom_call.1} parent=1 // pred_check
      _
    $region35: #{tpu_custom_call.1} parent=1 // pred_check_branch
      %63 = sbr.rel (0) target = $region37
    $region36: #{tpu_custom_call.1} parent=1 // pred_region
      %64 = dma.done [#allocation6], 1024
    $region37: #{tpu_custom_call.1} parent=1 // pred_fallthru
      _
    %v66 = vld [vmem:[#allocation5] sm:$0xff]
    %v67 = vld [vmem:[#allocation5 + $0x8] sm:$0xff]
    %v68 = vld [vmem:[#allocation2] sm:$0xf]
    %v69 = vld [vmem:[#allocation2 + $0x4] sm:$0xf]
    %v70 = vpack.c.bf16 %v67, %v66
    %v73 = vunpack.c.l.b16 %v68
    %v74 = vunpack.c.l.b16 %v69
    %v75 = vpack.c.b16 %v74, %v73
    %vm76 = vcmask 130048
    %v78 = vsel %vm76, %v75, 0
    %80 = vmatprep.subr.bf16.mxu0 0
    %81 = vmatpush1.bf16.msra.mxu0 %v70
    %82 = vmatprep.subr.bf16.mxu0 0
    %83 = vmatpush1.bf16.msra.mxu0 0
    %84 = vmatprep.subr.bf16.mxu0 0
    %85 = vmatpush1.bf16.msra.mxu0 0
    %86 = vmatprep.subr.bf16.mxu0 0
    %87 = vmatpush1.bf16.msra.mxu0 0
    %88 = vmatprep.subr.bf16.mxu0 0
    %89 = vmatpush1.bf16.msra.mxu0 0
    %90 = vmatprep.subr.bf16.mxu0 0
    %91 = vmatpush1.bf16.msra.mxu0 0
    %92 = vmatprep.subr.bf16.mxu0 0
    %93 = vmatpush1.bf16.msra.mxu0 0
    %94 = vmatprep.subr.bf16.mxu0 0
    %95 = vmatpush1.bf16.msra.mxu0 0
    %96 = vmatprep.subr.bf16.mxu0 0
    %97 = vmatpush1.bf16.msra.mxu0 0
    %98 = vmatprep.subr.bf16.mxu0 0
    %99 = vmatpush1.bf16.msra.mxu0 0
    %100 = vmatprep.subr.bf16.mxu0 0
    %101 = vmatpush1.bf16.msra.mxu0 0
    %102 = vmatprep.subr.bf16.mxu0 0
    %103 = vmatpush1.bf16.msra.mxu0 0
    %104 = vmatprep.subr.bf16.mxu0 0
    %105 = vmatpush1.bf16.msra.mxu0 0
    %106 = vmatprep.subr.bf16.mxu0 0
    %107 = vmatpush1.bf16.msra.mxu0 0
    %108 = vmatprep.subr.bf16.mxu0 0
    %109 = vmatpush1.bf16.msra.mxu0 0
    %110 = vmatprep.subr.bf16.mxu0 0
    %111 = vmatpush1.bf16.msra.mxu0 0
    %112 = vmatprep.mubr.bf16.mxu0 0
    %113 = vmatmul.mubr.bf16.gmra.mrb[0].mxu0 %v78
    %v114 = vpop.f32.mrb[0].mxu0
    %v115 = vadd.f32 0.0, %v114
    %v116 = vpop.f32.mrb[0].mxu0
    %v117 = vpop.f32.mrb[0].mxu0
    %v118 = vadd.f32 0.0, %v117
    %v119 = vpop.f32.mrb[0].mxu0
    %120 = vdwg.mxu0
    %v121 = vld [vmem:[%s3] sm:$0x1]
    %v122 = vld [vmem:[%s4] sm:$0x1]
    %v123 = vld [vmem:[%s5] sm:$0x1]
    %v124 = vld [vmem:[#allocation7] sm:$0xf]
    %v125 = vld [vmem:[#allocation7 + $0x4] sm:$0xf]
    %v126 = vld [vmem:[#allocation7 + $0x8] sm:$0xf]
    %v127 = vld [vmem:[#allocation7 + $0xc] sm:$0xf]
    %v128 = vld [vmem:[#allocation7 + $0x10] sm:$0xf]
    %v129 = vld [vmem:[#allocation7 + $0x14] sm:$0xf]
    %v130 = vld [vmem:[#allocation7 + $0x18] sm:$0xf]
    %v131 = vld [vmem:[#allocation7 + $0x1c] sm:$0xf]
    %v132 = vld [vmem:[#allocation7 + $0x20] sm:$0xf]
    %v133 = vld [vmem:[#allocation7 + $0x24] sm:$0xf]
    %v134 = vld [vmem:[#allocation7 + $0x28] sm:$0xf]
    %v135 = vld [vmem:[#allocation7 + $0x2c] sm:$0xf]
    %v136 = vld [vmem:[#allocation7 + $0x30] sm:$0xf]
    %v137 = vld [vmem:[#allocation7 + $0x34] sm:$0xf]
    %v138 = vld [vmem:[#allocation7 + $0x38] sm:$0xf]
    %v139 = vld [vmem:[#allocation7 + $0x3c] sm:$0xf]
    %v140 = vsub.f32 %v66, %v115
    %v141 = vsub.f32 %v67, %v118
    %v142 = vmul.f32 %v121, %v121
    %v144 = vlaneseq
    %v145 = vshrl.u32 %v144, 7
    %v146 = vsub.s32 0, %v145
    %v147 = vrot.slane %v142, %v146
    %v149 = vmul.f32 %v147, %v140
    %v150 = vmul.f32 %v147, %v141
    %v151 = vadd.f32 %v115, %v149
    %v152 = vadd.f32 %v118, %v150
    %v153 = vadd.f32 %v151, %v66
    %v154 = vadd.f32 %v152, %v67
    %v155 = vpack.c.bf16 %v154, %v153
    %v172 = vunpack.c.l.b16 %v124
    %v173 = vunpack.c.l.b16 %v125
    %v174 = vunpack.c.l.b16 %v126
    %v175 = vunpack.c.l.b16 %v127
    %v176 = vunpack.c.l.b16 %v128
    %v177 = vunpack.c.l.b16 %v129
    %v178 = vunpack.c.l.b16 %v130
    %v179 = vunpack.c.l.b16 %v131
    %v180 = vunpack.c.l.b16 %v132
    %v181 = vunpack.c.l.b16 %v133
    %v182 = vunpack.c.l.b16 %v134
    %v183 = vunpack.c.l.b16 %v135
    %v184 = vunpack.c.l.b16 %v136
    %v185 = vunpack.c.l.b16 %v137
    %v186 = vunpack.c.l.b16 %v138
    %v187 = vunpack.c.l.b16 %v139
    %v188 = vpack.c.b16 %v173, %v172
    %v189 = vpack.c.b16 %v175, %v174
    %v190 = vpack.c.b16 %v177, %v176
    %v191 = vpack.c.b16 %v179, %v178
    %v192 = vpack.c.b16 %v181, %v180
    %v193 = vpack.c.b16 %v183, %v182
    %v194 = vpack.c.b16 %v185, %v184
    %v195 = vpack.c.b16 %v187, %v186
    %204 = vmatprep.subr.bf16.mxu0 0
    %205 = vmatpush1.bf16.msra.mxu0 %v188
    %206 = vmatprep.subr.bf16.mxu0 0
    %207 = vmatpush1.bf16.msra.mxu0 %v189
    %208 = vmatprep.subr.bf16.mxu0 0
    %209 = vmatpush1.bf16.msra.mxu0 %v190
    %210 = vmatprep.subr.bf16.mxu0 0
    %211 = vmatpush1.bf16.msra.mxu0 %v191
    %212 = vmatprep.subr.bf16.mxu0 0
    %213 = vmatpush1.bf16.msra.mxu0 %v192
    %214 = vmatprep.subr.bf16.mxu0 0
    %215 = vmatpush1.bf16.msra.mxu0 %v193
    %216 = vmatprep.subr.bf16.mxu0 0
    %217 = vmatpush1.bf16.msra.mxu0 %v194
    %218 = vmatprep.subr.bf16.mxu0 0
    %219 = vmatpush1.bf16.msra.mxu0 %v195
    %220 = vmatprep.subr.bf16.mxu0 0
    %221 = vmatpush1.bf16.msra.mxu0 0
    %222 = vmatprep.subr.bf16.mxu0 0
    %223 = vmatpush1.bf16.msra.mxu0 0
    %224 = vmatprep.subr.bf16.mxu0 0
    %225 = vmatpush1.bf16.msra.mxu0 0
    %226 = vmatprep.subr.bf16.mxu0 0
    %227 = vmatpush1.bf16.msra.mxu0 0
    %228 = vmatprep.subr.bf16.mxu0 0
    %229 = vmatpush1.bf16.msra.mxu0 0
    %230 = vmatprep.subr.bf16.mxu0 0
    %231 = vmatpush1.bf16.msra.mxu0 0
    %232 = vmatprep.subr.bf16.mxu0 0
    %233 = vmatpush1.bf16.msra.mxu0 0
    %234 = vmatprep.subr.bf16.mxu0 0
    %235 = vmatpush1.bf16.msra.mxu0 0
    %236 = vmatprep.mubr.bf16.mxu0 0
    %237 = vmatmul.mubr.bf16.gmra.mrb[0].mxu0 %v155
    %v238 = vpop.f32.mrb[0].mxu0
    %v239 = vadd.f32 0.0, %v238
    %v240 = vpop.f32.mrb[0].mxu0
    %v241 = vpop.f32.mrb[0].mxu0
    %v242 = vadd.f32 0.0, %v241
    %v243 = vpop.f32.mrb[0].mxu0
    %244 = vdwg.mxu0
    %v245 = vmul.f32 %v239, 0.03125
    %v246 = vmul.f32 %v242, 0.03125
    %v247 = vsub.f32 %v153, %v245
    %v248 = vsub.f32 %v154, %v246
    %v249 = vmul.f32 %v247, %v247
    %v250 = vmul.f32 %v248, %v248
    %v251 = vpack.c.bf16 %v250, %v249
    %252 = vmatprep.subr.bf16.mxu0 0
    %253 = vmatpush1.bf16.msra.mxu0 %v188
    %254 = vmatprep.subr.bf16.mxu0 0
    %255 = vmatpush1.bf16.msra.mxu0 %v189
    %256 = vmatprep.subr.bf16.mxu0 0
    %257 = vmatpush1.bf16.msra.mxu0 %v190
    %258 = vmatprep.subr.bf16.mxu0 0
    %259 = vmatpush1.bf16.msra.mxu0 %v191
    %260 = vmatprep.subr.bf16.mxu0 0
    %261 = vmatpush1.bf16.msra.mxu0 %v192
    %262 = vmatprep.subr.bf16.mxu0 0
    %263 = vmatpush1.bf16.msra.mxu0 %v193
    %264 = vmatprep.subr.bf16.mxu0 0
    %265 = vmatpush1.bf16.msra.mxu0 %v194
    %266 = vmatprep.subr.bf16.mxu0 0
    %267 = vmatpush1.bf16.msra.mxu0 %v195
    %268 = vmatprep.subr.bf16.mxu0 0
    %269 = vmatpush1.bf16.msra.mxu0 0
    %270 = vmatprep.subr.bf16.mxu0 0
    %271 = vmatpush1.bf16.msra.mxu0 0
    %272 = vmatprep.subr.bf16.mxu0 0
    %273 = vmatpush1.bf16.msra.mxu0 0
    %274 = vmatprep.subr.bf16.mxu0 0
    %275 = vmatpush1.bf16.msra.mxu0 0
    %276 = vmatprep.subr.bf16.mxu0 0
    %277 = vmatpush1.bf16.msra.mxu0 0
    %278 = vmatprep.subr.bf16.mxu0 0
    %279 = vmatpush1.bf16.msra.mxu0 0
    %280 = vmatprep.subr.bf16.mxu0 0
    %281 = vmatpush1.bf16.msra.mxu0 0
    %282 = vmatprep.subr.bf16.mxu0 0
    %283 = vmatpush1.bf16.msra.mxu0 0
    %284 = vmatprep.mubr.bf16.mxu0 0
    %285 = vmatmul.mubr.bf16.gmra.mrb[0].mxu0 %v251
    %v286 = vpop.f32.mrb[0].mxu0
    %v287 = vadd.f32 0.0, %v286
    %v288 = vpop.f32.mrb[0].mxu0
    %v289 = vpop.f32.mrb[0].mxu0
    %v290 = vadd.f32 0.0, %v289
    %v291 = vpop.f32.mrb[0].mxu0
    %292 = vdwg.mxu0
    %v293 = vmul.f32 %v287, 0.03125
    %v294 = vmul.f32 %v290, 0.03125
    %v295 = vadd.f32 %v293, 1e-05
    %v296 = vadd.f32 %v294, 1e-05
    %v297 = vrsqrt.pop %v295
    %v298 = vrsqrt.pop %v296
    %v299 = vmul.f32 %v247, %v297
    %v300 = vmul.f32 %v248, %v298
    %v302 = vlaneseq
    %v303 = vshrl.u32 %v302, 7
    %v304 = vsub.s32 0, %v303
    %v305 = vrot.slane %v122, %v304
    %v307 = vmul.f32 %v299, %v305
    %v308 = vmul.f32 %v300, %v305
    %v310 = vlaneseq
    %v311 = vshrl.u32 %v310, 7
    %v312 = vsub.s32 0, %v311
    %v313 = vrot.slane %v123, %v312
    %v315 = vadd.f32 %v307, %v313
    %v316 = vadd.f32 %v308, %v313
    %317 = vst [vmem:[#allocation8] sm:$0xff] %v315
    %318 = vst [vmem:[#allocation8 + $0x8] sm:$0xff] %v316
    // Predicated region
    $region38: #{tpu_custom_call.1} parent=1 // pred_check
      _
    $region39: #{tpu_custom_call.1} parent=1 // pred_check_branch
      %320 = sbr.rel (0) target = $region41
    $region40: #{tpu_custom_call.1} parent=1 // pred_region
      %s322 = ssub.s32 256, 256
      %323 = vsyncadd [#allocation4], %s322
      %s324 = sshll.u32 [#allocation8], 4
      %s325 = int_to_ptr.vmem [resolvable:$true] %s324
      %330 = dma.vmem_to_hbm [thread:$0]  %s325, 256, %s6, [#allocation4], 128, 128, 8
    $region41: #{tpu_custom_call.1} parent=1 // pred_fallthru
      _
    // Predicated region
    $region42: #{tpu_custom_call.1} parent=1 // pred_check
      _
    $region43: #{tpu_custom_call.1} parent=1 // pred_check_branch
      %332 = sbr.rel (0) target = $region45
    $region44: #{tpu_custom_call.1} parent=1 // pred_region
      %333 = dma.done [#allocation4], 256
    $region45: #{tpu_custom_call.1} parent=1 // pred_fallthru
      _
    %334 = vsyncpa [#allocation3], 1
    %335 = vsyncpa [#allocation6], 1
    %336 = vsyncpa [#allocation4], 1

</llo_original>
